<compile_context>
chip_gen: v7x
topology: tpu7x:2x2x1
jax: 0.10.0
libtpu: 0.0.40
codegen_flags: <defaults>
</compile_context>

<pallas_src>
import jax
import jax.numpy as jnp
from jax.experimental import pallas as pl
from jax.experimental.pallas import tpu as pltpu

# Logical (PyTorch) dims.
D_IN, D_H1, D_H2, D_OUT = 103, 500, 100, 14
# Lane-padded dims (multiples of 128): dense MXU tiles, no masked loads/stores.
P_IN, P_H1, P_H2, P_OUT = 128, 512, 128, 128


def _round_up(n, m):
    return ((n + m - 1) // m) * m


def _num_tensorcores():
    """TensorCores one kernel launch can shard a 'parallel' grid axis across."""
    try:
        kind = str(getattr(jax.devices()[0], "device_kind", "")).lower()
    except Exception:
        return 1
    # Megacore chips (v4, v5p) and v7x expose 2 TensorCores per device.
    if any(tag in kind for tag in ("v4", "v5p", "v7", "7x")):
        return 2
    return 1


def _choose_tiling(B, batch_tile, sublane, n_tc):
    """Pick (batch tile, padded batch, grid steps)."""
    cap = max(sublane, _round_up(batch_tile, sublane))
    if n_tc <= 1:
        # Single TC: the grid is a sequential loop -> fewest, biggest steps.
        steps = max(1, pl.cdiv(B, cap))
    else:
        # Dual TC: even number of steps so both cores get equal work.
        steps = 2 * max(1, pl.cdiv(pl.cdiv(B, 2), cap))
    tile = _round_up(pl.cdiv(B, steps), sublane)
    b_pad = steps * tile
    return tile, b_pad, steps


def mlp_kernel(x_ref, w1_ref, b1_ref, w2_ref, b2_ref, w3_ref, b3_ref, o_ref):
    cdt = w1_ref.dtype  # compute dtype of the matmul inputs (bf16 or f32)

    h1 = jnp.dot(x_ref[...], w1_ref[...], preferred_element_type=jnp.float32) + b1_ref[...]
    h1 = jnp.maximum(h1, 0.0).astype(cdt)

    h2 = jnp.dot(h1, w2_ref[...], preferred_element_type=jnp.float32) + b2_ref[...]
    h2 = jnp.maximum(h2, 0.0).astype(cdt)

    logits = jnp.dot(h2, w3_ref[...], preferred_element_type=jnp.float32) + b3_ref[...]
    o_ref[...] = jax.nn.sigmoid(logits).astype(o_ref.dtype)


def _pad2d(a, rows, cols, dtype):
    """Zero-pad a 2-D array to (rows, cols) and cast."""
    return jnp.zeros((rows, cols), dtype).at[: a.shape[0], : a.shape[1]].set(a.astype(dtype))


def linear_model_forward(x, params, *, batch_tile=2048,
                         compute_dtype=jnp.bfloat16, out_dtype=None,
                         vmem_limit_bytes=None):
    """x: [B, 103] float32 -> [B, 14] float32 (sigmoid probabilities)."""
    w1, b1, w2, b2, w3, b3 = params
    B = x.shape[0]
    compute_dtype = jnp.dtype(compute_dtype)
    if out_dtype is None:
        # bf16 writeback halves the dominant HBM stream; padded cols/rows are
        # sliced off below, outputs are sigmoid-bounded so bf16 is plenty.
        out_dtype = compute_dtype
    out_dtype = jnp.dtype(out_dtype)

    sublane = 16 if compute_dtype == jnp.dtype(jnp.bfloat16) else 8
    tile, B_pad, steps = _choose_tiling(B, batch_tile, sublane, _num_tensorcores())
    grid = (steps,)

    # Zero-pad x to [B_pad, 128] and cast to the MXU compute dtype.
    # If the producer already hands us a padded slab in compute_dtype, skip the
    # extra HBM round trip entirely.
    if x.shape == (B_pad, P_IN) and x.dtype == compute_dtype:
        xp = x
    else:
        xp = jnp.zeros((B_pad, P_IN), compute_dtype).at[:B, : x.shape[1]].set(
            x.astype(compute_dtype))

    # Zero-pad weights/biases to 128-multiples (exact: padded K-dims are zero).
    w1p = _pad2d(w1, P_IN, P_H1, compute_dtype)
    w2p = _pad2d(w2, P_H1, P_H2, compute_dtype)
    w3p = _pad2d(w3, P_H2, P_OUT, compute_dtype)
    b1p = _pad2d(b1, 1, P_H1, jnp.float32)
    b2p = _pad2d(b2, 1, P_H2, jnp.float32)
    b3p = _pad2d(b3, 1, P_OUT, jnp.float32)

    full = lambda shape: pl.BlockSpec(shape, lambda i: (0, 0))  # grid-invariant block

    itemsize = compute_dtype.itemsize
    cost = pl.CostEstimate(
        flops=2 * B_pad * (P_IN * P_H1 + P_H1 * P_H2 + P_H2 * P_OUT),
        transcendentals=B_pad * P_OUT,  # sigmoid exp
        bytes_accessed=(xp.size * itemsize
                        + (w1p.size + w2p.size + w3p.size) * itemsize
                        + (b1p.size + b2p.size + b3p.size) * 4
                        + B_pad * P_OUT * out_dtype.itemsize),
    )

    out_padded = pl.pallas_call(
        mlp_kernel,
        out_shape=jax.ShapeDtypeStruct((B_pad, P_OUT), out_dtype),
        grid_spec=pltpu.PrefetchScalarGridSpec(
            num_scalar_prefetch=0,
            grid=grid,
            in_specs=[
                pl.BlockSpec((tile, P_IN), lambda i: (i, 0)),  # x batch tile
                full((P_IN, P_H1)),   # W1 (padded, resident in VMEM, never re-DMA'd)
                full((1, P_H1)),      # b1
                full((P_H1, P_H2)),   # W2
                full((1, P_H2)),      # b2
                full((P_H2, P_OUT)),  # W3
                full((1, P_OUT)),     # b3
            ],
            out_specs=pl.BlockSpec((tile, P_OUT), lambda i: (i, 0)),  # lane-dense output
        ),
        compiler_params=pltpu.CompilerParams(
            dimension_semantics=("parallel",),
            vmem_limit_bytes=vmem_limit_bytes,
        ),
        cost_estimate=cost,
    )(xp, w1p, b1p, w2p, b2p, w3p, b3p)

    # Slice off batch padding and the lane-padding of the 14-wide output; the
    # caller gets f32 like the PyTorch module.  Under jit this slice/cast fuses
    # into the consumer.
    out = out_padded[:B, :D_OUT]
    return out if out.dtype == jnp.float32 else out.astype(jnp.float32)


def init_params(key):
    """Deterministic init matching PyTorch nn.Linear default (uniform +/- 1/sqrt(fan_in)).
    Weights stored as [in_features, out_features] so the kernel computes x @ W + b."""
    ks = jax.random.split(key, 6)

    def linear(kw, kb, fan_in, fan_out):
        bound = 1.0 / jnp.sqrt(jnp.float32(fan_in))
        w = jax.random.uniform(kw, (fan_in, fan_out), jnp.float32, -bound, bound)
        b = jax.random.uniform(kb, (1, fan_out), jnp.float32, -bound, bound)
        return w, b

    w1, b1 = linear(ks[0], ks[1], D_IN, D_H1)
    w2, b2 = linear(ks[2], ks[3], D_H1, D_H2)
    w3, b3 = linear(ks[4], ks[5], D_H2, D_OUT)
    return (w1, b1, w2, b2, w3, b3)


def reference_forward(x, params):
    w1, b1, w2, b2, w3, b3 = params
    h1 = jax.nn.relu(x @ w1 + b1)
    h2 = jax.nn.relu(h1 @ w2 + b2)
    return jax.nn.sigmoid(h2 @ w3 + b3)


if __name__ == "__main__":
    key = jax.random.PRNGKey(0)
    k_x, k_p = jax.random.split(key)

    # Small batch, not a multiple of 8/16: exercises batch padding and the
    # generation-aware tile selection (1 step on v5e/v6e, 2 steps on v7x).
    B = 37
    x = jax.random.normal(k_x, (B, D_IN), jnp.float32)
    params = init_params(k_p)

    ref = reference_forward(x, params)

    # f32 compute path: validates the zero-padding / tiling / output-slicing
    # logic.  Tolerance loosened vs exact equality since the MXU f32 path need
    # not bit-match XLA's default-precision reference dot.
    out_f32 = jax.block_until_ready(
        linear_model_forward(x, params, compute_dtype=jnp.float32))
    assert out_f32.shape == (B, D_OUT), out_f32.shape
    assert jnp.allclose(out_f32, ref, atol=2e-3, rtol=1e-3), \
        float(jnp.max(jnp.abs(out_f32 - ref)))

    # Force a multi-step grid (tiny batch_tile) to exercise tiling + padding of
    # the last tile on both single- and dual-TC chips.
    out_multi = jax.block_until_ready(
        linear_model_forward(x, params, batch_tile=16, compute_dtype=jnp.float32))
    assert out_multi.shape == (B, D_OUT), out_multi.shape
    assert jnp.allclose(out_multi, ref, atol=2e-3, rtol=1e-3), \
        float(jnp.max(jnp.abs(out_multi - ref)))

    # Default fast path: bf16 weights/activations on the MXU, f32 accumulation,
    # bf16 output writeback.
    out = jax.block_until_ready(linear_model_forward(x, params))
    assert out.shape == (B, D_OUT), out.shape
    assert out.dtype == jnp.float32
    assert jnp.allclose(out, ref, atol=3e-2), float(jnp.max(jnp.abs(out - ref)))

    print("KERNEL_OK")
</pallas_src>

<mosaic_0001>
module attributes {stable_mosaic.version = 11 : i64} {
  func.func @mlp_kernel(%arg0: i32, %arg1: memref<40x128xf32, #tpu.memory_space<vmem>>, %arg2: memref<128x512xf32, #tpu.memory_space<vmem>>, %arg3: memref<1x512xf32, #tpu.memory_space<vmem>>, %arg4: memref<512x128xf32, #tpu.memory_space<vmem>>, %arg5: memref<1x128xf32, #tpu.memory_space<vmem>>, %arg6: memref<128x128xf32, #tpu.memory_space<vmem>>, %arg7: memref<1x128xf32, #tpu.memory_space<vmem>>, %arg8: memref<40x128xf32, #tpu.memory_space<vmem>>) attributes {dimension_semantics = [#tpu.dimension_semantics<parallel>], iteration_bounds = array<i64: 1>, scalar_prefetch = 0 : i64, scratch_operands = 0 : i64, tpu.core_type = #tpu.core_type<tc>, window_params = [{transform_indices = @transform_0, window_bounds = array<i64: 40, 128>}, {pipeline_mode = #tpu.pipeline_mode<synchronous>, transform_indices = @transform_1, window_bounds = array<i64: 128, 512>}, {pipeline_mode = #tpu.pipeline_mode<synchronous>, transform_indices = @transform_2, window_bounds = array<i64: 1, 512>}, {pipeline_mode = #tpu.pipeline_mode<synchronous>, transform_indices = @transform_3, window_bounds = array<i64: 512, 128>}, {pipeline_mode = #tpu.pipeline_mode<synchronous>, transform_indices = @transform_4, window_bounds = array<i64: 1, 128>}, {pipeline_mode = #tpu.pipeline_mode<synchronous>, transform_indices = @transform_5, window_bounds = array<i64: 128, 128>}, {pipeline_mode = #tpu.pipeline_mode<synchronous>, transform_indices = @transform_6, window_bounds = array<i64: 1, 128>}, {transform_indices = @transform_7, window_bounds = array<i64: 40, 128>}]} {
    %c0 = arith.constant 0 : index
    %c0_0 = arith.constant 0 : index
    %0 = vector.load %arg1[%c0, %c0_0] : memref<40x128xf32, #tpu.memory_space<vmem>>, vector<40x128xf32>
    %c0_1 = arith.constant 0 : index
    %c0_2 = arith.constant 0 : index
    %1 = vector.load %arg2[%c0_1, %c0_2] : memref<128x512xf32, #tpu.memory_space<vmem>>, vector<128x512xf32>
    %cst = arith.constant dense<0.000000e+00> : vector<40x512xf32>
    %2 = tpu.matmul %0, %1, %cst {dimension_numbers = #tpu.dot_dimension_numbers<[1], [0], [0], [1], [0, 0, 1, 1], [], []>} : vector<40x128xf32>, vector<128x512xf32>, vector<40x512xf32> -> vector<40x512xf32>
    %c0_3 = arith.constant 0 : index
    %c0_4 = arith.constant 0 : index
    %3 = vector.load %arg3[%c0_3, %c0_4] : memref<1x512xf32, #tpu.memory_space<vmem>>, vector<1x512xf32>
    %4 = vector.broadcast %3 : vector<1x512xf32> to vector<40x512xf32>
    %5 = arith.addf %2, %4 : vector<40x512xf32>
    %cst_5 = arith.constant 0.000000e+00 : f32
    %6 = vector.broadcast %cst_5 : f32 to vector<40x512xf32>
    %7 = arith.maximumf %5, %6 : vector<40x512xf32>
    %c0_6 = arith.constant 0 : index
    %c0_7 = arith.constant 0 : index
    %8 = vector.load %arg4[%c0_6, %c0_7] : memref<512x128xf32, #tpu.memory_space<vmem>>, vector<512x128xf32>
    %cst_8 = arith.constant dense<0.000000e+00> : vector<40x128xf32>
    %9 = tpu.matmul %7, %8, %cst_8 {dimension_numbers = #tpu.dot_dimension_numbers<[1], [0], [0], [1], [0, 0, 1, 1], [], []>} : vector<40x512xf32>, vector<512x128xf32>, vector<40x128xf32> -> vector<40x128xf32>
    %c0_9 = arith.constant 0 : index
    %c0_10 = arith.constant 0 : index
    %10 = vector.load %arg5[%c0_9, %c0_10] : memref<1x128xf32, #tpu.memory_space<vmem>>, vector<1x128xf32>
    %11 = vector.broadcast %10 : vector<1x128xf32> to vector<40x128xf32>
    %12 = arith.addf %9, %11 : vector<40x128xf32>
    %cst_11 = arith.constant 0.000000e+00 : f32
    %13 = vector.broadcast %cst_11 : f32 to vector<40x128xf32>
    %14 = arith.maximumf %12, %13 : vector<40x128xf32>
    %c0_12 = arith.constant 0 : index
    %c0_13 = arith.constant 0 : index
    %15 = vector.load %arg6[%c0_12, %c0_13] : memref<128x128xf32, #tpu.memory_space<vmem>>, vector<128x128xf32>
    %cst_14 = arith.constant dense<0.000000e+00> : vector<40x128xf32>
    %16 = tpu.matmul %14, %15, %cst_14 {dimension_numbers = #tpu.dot_dimension_numbers<[1], [0], [0], [1], [0, 0, 1, 1], [], []>} : vector<40x128xf32>, vector<128x128xf32>, vector<40x128xf32> -> vector<40x128xf32>
    %c0_15 = arith.constant 0 : index
    %c0_16 = arith.constant 0 : index
    %17 = vector.load %arg7[%c0_15, %c0_16] : memref<1x128xf32, #tpu.memory_space<vmem>>, vector<1x128xf32>
    %18 = vector.broadcast %17 : vector<1x128xf32> to vector<40x128xf32>
    %19 = arith.addf %16, %18 : vector<40x128xf32>
    %20 = arith.negf %19 : vector<40x128xf32>
    %21 = math.exp %20 : vector<40x128xf32>
    %cst_17 = arith.constant 1.000000e+00 : f32
    %22 = vector.broadcast %cst_17 : f32 to vector<40x128xf32>
    %23 = arith.addf %22, %21 : vector<40x128xf32>
    %24 = arith.divf %22, %23 : vector<40x128xf32>
    %c0_18 = arith.constant 0 : index
    %c0_19 = arith.constant 0 : index
    %25 = vector.load %arg8[%c0_18, %c0_19] : memref<40x128xf32, #tpu.memory_space<vmem>>, vector<40x128xf32>
    tpu.vector_store %arg8[%c0_18, %c0_19], %24 {strides = array<i32>} : memref<40x128xf32, #tpu.memory_space<vmem>>, vector<40x128xf32>,
    return
  }
  func.func @transform_0(%arg0: i32) -> (i32, i32) {
    %c0_i32 = arith.constant 0 : i32
    %c0_i32_0 = arith.constant 0 : i32
    return %arg0, %c0_i32 : i32, i32
  }
  func.func @transform_1(%arg0: i32) -> (i32, i32) {
    %c0_i32 = arith.constant 0 : i32
    %c0_i32_0 = arith.constant 0 : i32
    %c0_i32_1 = arith.constant 0 : i32
    return %c0_i32, %c0_i32_0 : i32, i32
  }
  func.func @transform_2(%arg0: i32) -> (i32, i32) {
    %c0_i32 = arith.constant 0 : i32
    %c0_i32_0 = arith.constant 0 : i32
    %c0_i32_1 = arith.constant 0 : i32
    return %c0_i32, %c0_i32_0 : i32, i32
  }
  func.func @transform_3(%arg0: i32) -> (i32, i32) {
    %c0_i32 = arith.constant 0 : i32
    %c0_i32_0 = arith.constant 0 : i32
    %c0_i32_1 = arith.constant 0 : i32
    return %c0_i32, %c0_i32_0 : i32, i32
  }
  func.func @transform_4(%arg0: i32) -> (i32, i32) {
    %c0_i32 = arith.constant 0 : i32
    %c0_i32_0 = arith.constant 0 : i32
    %c0_i32_1 = arith.constant 0 : i32
    return %c0_i32, %c0_i32_0 : i32, i32
  }
  func.func @transform_5(%arg0: i32) -> (i32, i32) {
    %c0_i32 = arith.constant 0 : i32
    %c0_i32_0 = arith.constant 0 : i32
    %c0_i32_1 = arith.constant 0 : i32
    return %c0_i32, %c0_i32_0 : i32, i32
  }
  func.func @transform_6(%arg0: i32) -> (i32, i32) {
    %c0_i32 = arith.constant 0 : i32
    %c0_i32_0 = arith.constant 0 : i32
    %c0_i32_1 = arith.constant 0 : i32
    return %c0_i32, %c0_i32_0 : i32, i32
  }
  func.func @transform_7(%arg0: i32) -> (i32, i32) {
    %c0_i32 = arith.constant 0 : i32
    %c0_i32_0 = arith.constant 0 : i32
    return %arg0, %c0_i32 : i32, i32
  }
}

</mosaic_0001>

<llo_original>
// kernel: tpu_custom_call.1
$region0: #{tpu_custom_call.1}
  #allocation0 [shape = 'u32[]', space=smem, size = 0x4, offset = 0x4, fixed_abs, tag = 'smem constant byte address 0x4 - core index']
  #allocation1 [shape = 'u32[144,128]{1,0:T(1,128)}', space=vmem, size = 0x12000, scoped, tag = 'internal scratch']
  %s0 = inlined_call_operand.hbm [shape: f32[40,128], index: 0, kind: input, shape index: {}]
  %s1 = inlined_call_operand.hbm [shape: f32[128,512], index: 1, kind: input, shape index: {}]
  %s2 = inlined_call_operand.vmem [shape: f32[1,512], index: 2, kind: input, shape index: {}]
  %s3 = inlined_call_operand.hbm [shape: f32[512,128], index: 3, kind: input, shape index: {}]
  %s4 = inlined_call_operand.vmem [shape: f32[1,128], index: 4, kind: input, shape index: {}]
  %s5 = inlined_call_operand.hbm [shape: f32[128,128], index: 5, kind: input, shape index: {}]
  %s6 = inlined_call_operand.vmem [shape: f32[1,128], index: 6, kind: input, shape index: {}]
  %s7 = inlined_call_operand.hbm [shape: f32[40,128], index: 7, kind: output, shape index: {}]
  %s8 = sld [smem:[#allocation0]]
  $region54: #{tpu_custom_call.1} parent=0
    _
  %s10 = ssub.s32 1, %s8
  %s11 = scalar_select 0, %s10, %s8
  $region1: #{tpu_custom_call.1} parent=0
    #allocation2 [shape = 'u8[20480]{0}', space=vmem, size = 0x5000, scoped, tag = 'input window, operand 0, single buffered']
    #allocation3 [shape = 's32[1]{0}', space=sflag, size = 0x4, scoped, tag = 'scoped memory for tpu_custom_call.1']
    #allocation4 [shape = 's32[1]{0}', space=sflag, size = 0x4, scoped, tag = 'scoped memory for tpu_custom_call.1']
    #allocation5 [shape = 'u8[262144]{0}', space=vmem, size = 0x40000, scoped, tag = 'input window, operand 1, single buffered']
    #allocation6 [shape = 's32[1]{0}', space=sflag, size = 0x4, scoped, tag = 'scoped memory for tpu_custom_call.1']
    #allocation7 [shape = 'u8[262144]{0}', space=vmem, size = 0x40000, scoped, tag = 'input window, operand 3, single buffered']
    #allocation8 [shape = 'u8[65536]{0}', space=vmem, size = 0x10000, scoped, tag = 'input window, operand 5, single buffered']
    #allocation9 [shape = 's32[1]{0}', space=sflag, size = 0x4, scoped, tag = 'scoped memory for tpu_custom_call.1']
    #allocation10 [shape = 'u8[20480]{0}', space=vmem, size = 0x5000, scoped, tag = 'output window, operand 0, single buffered']
    %12 = vsyncpa [#allocation3], 0
    %13 = vsyncpa [#allocation6], 0
    %14 = vsyncpa [#allocation9], 0
    %15 = vsyncpa [#allocation4], 0
    // Predicated region
    $region2: #{tpu_custom_call.1} parent=1 // pred_check
      _
    $region3: #{tpu_custom_call.1} parent=1 // pred_check_branch
      %17 = sbr.rel (0) target = $region5
    $region4: #{tpu_custom_call.1} parent=1 // pred_region
      %s19 = ssub.s32 640, 640
      %20 = vsyncadd [#allocation3], %s19
      %s21 = sshll.u32 [#allocation2], 4
      %s22 = int_to_ptr.vmem [resolvable:$true] %s21
      %27 = dma.hbm_to_vmem [thread:$0]  %s0, 640, %s22, [#allocation3], 128, 128, 8
    $region5: #{tpu_custom_call.1} parent=1 // pred_fallthru
      _
    // Predicated region
    $region6: #{tpu_custom_call.1} parent=1 // pred_check
      _
    $region7: #{tpu_custom_call.1} parent=1 // pred_check_branch
      %29 = sbr.rel (0) target = $region9
    $region8: #{tpu_custom_call.1} parent=1 // pred_region
      %s31 = ssub.s32 8192, 8192
      %32 = vsyncadd [#allocation6], %s31
      %s33 = sshll.u32 [#allocation5], 4
      %s34 = int_to_ptr.vmem [resolvable:$true] %s33
      %39 = dma.hbm_to_vmem [thread:$0]  %s1, 8192, %s34, [#allocation6], 512, 512, 32
    $region9: #{tpu_custom_call.1} parent=1 // pred_fallthru
      _
    // Predicated region
    $region10: #{tpu_custom_call.1} parent=1 // pred_check
      _
    $region11: #{tpu_custom_call.1} parent=1 // pred_check_branch
      %41 = sbr.rel (0) target = $region13
    $region12: #{tpu_custom_call.1} parent=1 // pred_region
      _
    $region13: #{tpu_custom_call.1} parent=1 // pred_fallthru
      _
    // Predicated region
    $region14: #{tpu_custom_call.1} parent=1 // pred_check
      _
    $region15: #{tpu_custom_call.1} parent=1 // pred_check_branch
      %43 = sbr.rel (0) target = $region17
    $region16: #{tpu_custom_call.1} parent=1 // pred_region
      %s45 = ssub.s32 8192, 8192
      %46 = vsyncadd [#allocation6], %s45
      %s47 = sshll.u32 [#allocation7], 4
      %s48 = int_to_ptr.vmem [resolvable:$true] %s47
      %53 = dma.hbm_to_vmem [thread:$0]  %s3, 8192, %s48, [#allocation6], 128, 128, 8
    $region17: #{tpu_custom_call.1} parent=1 // pred_fallthru
      _
    // Predicated region
    $region18: #{tpu_custom_call.1} parent=1 // pred_check
      _
    $region19: #{tpu_custom_call.1} parent=1 // pred_check_branch
      %55 = sbr.rel (0) target = $region21
    $region20: #{tpu_custom_call.1} parent=1 // pred_region
      _
    $region21: #{tpu_custom_call.1} parent=1 // pred_fallthru
      _
    // Predicated region
    $region22: #{tpu_custom_call.1} parent=1 // pred_check
      _
    $region23: #{tpu_custom_call.1} parent=1 // pred_check_branch
      %57 = sbr.rel (0) target = $region25
    $region24: #{tpu_custom_call.1} parent=1 // pred_region
      %s59 = ssub.s32 2048, 2048
      %60 = vsyncadd [#allocation9], %s59
      %s61 = sshll.u32 [#allocation8], 4
      %s62 = int_to_ptr.vmem [resolvable:$true] %s61
      %67 = dma.hbm_to_vmem [thread:$0]  %s5, 2048, %s62, [#allocation9], 128, 128, 8
    $region25: #{tpu_custom_call.1} parent=1 // pred_fallthru
      _
    // Predicated region
    $region26: #{tpu_custom_call.1} parent=1 // pred_check
      _
    $region27: #{tpu_custom_call.1} parent=1 // pred_check_branch
      %69 = sbr.rel (0) target = $region29
    $region28: #{tpu_custom_call.1} parent=1 // pred_region
      _
    $region29: #{tpu_custom_call.1} parent=1 // pred_fallthru
      _
    // Predicated region
    $region30: #{tpu_custom_call.1} parent=1 // pred_check
      _
    $region31: #{tpu_custom_call.1} parent=1 // pred_check_branch
      %71 = sbr.rel (0) target = $region33
    $region32: #{tpu_custom_call.1} parent=1 // pred_region
      %72 = dma.done [#allocation3], 640
    $region33: #{tpu_custom_call.1} parent=1 // pred_fallthru
      _
    // Predicated region
    $region34: #{tpu_custom_call.1} parent=1 // pred_check
      _
    $region35: #{tpu_custom_call.1} parent=1 // pred_check_branch
      %74 = sbr.rel (0) target = $region37
    $region36: #{tpu_custom_call.1} parent=1 // pred_region
      %75 = dma.done [#allocation6], 8192
    $region37: #{tpu_custom_call.1} parent=1 // pred_fallthru
      _
    // Predicated region
    $region38: #{tpu_custom_call.1} parent=1 // pred_check
      _
    $region39: #{tpu_custom_call.1} parent=1 // pred_check_branch
      %77 = sbr.rel (0) target = $region41
    $region40: #{tpu_custom_call.1} parent=1 // pred_region
      %78 = dma.done [#allocation6], 8192
    $region41: #{tpu_custom_call.1} parent=1 // pred_fallthru
      _
    // Predicated region
    $region42: #{tpu_custom_call.1} parent=1 // pred_check
      _
    $region43: #{tpu_custom_call.1} parent=1 // pred_check_branch
      %80 = sbr.rel (0) target = $region45
    $region44: #{tpu_custom_call.1} parent=1 // pred_region
      %81 = dma.done [#allocation9], 2048
    $region45: #{tpu_custom_call.1} parent=1 // pred_fallthru
      _
    %v82 = vld [vmem:[#allocation2] sm:$0xff]
    %v83 = vld [vmem:[#allocation2 + $0x8] sm:$0xff]
    %v84 = vld [vmem:[#allocation2 + $0x10] sm:$0xff]
    %v85 = vld [vmem:[#allocation2 + $0x18] sm:$0xff]
    %v86 = vld [vmem:[#allocation2 + $0x20] sm:$0xff]
    %v87 = vld [vmem:[#allocation5] sm:$0xff]
    %v88 = vld [vmem:[#allocation5 + $0x8] sm:$0xff]
    %v89 = vld [vmem:[#allocation5 + $0x10] sm:$0xff]
    %v90 = vld [vmem:[#allocation5 + $0x18] sm:$0xff]
    %v91 = vld [vmem:[#allocation5 + $0x20] sm:$0xff]
    %v92 = vld [vmem:[#allocation5 + $0x28] sm:$0xff]
    %v93 = vld [vmem:[#allocation5 + $0x30] sm:$0xff]
    %v94 = vld [vmem:[#allocation5 + $0x38] sm:$0xff]
    %v95 = vld [vmem:[#allocation5 + $0x40] sm:$0xff]
    %v96 = vld [vmem:[#allocation5 + $0x48] sm:$0xff]
    %v97 = vld [vmem:[#allocation5 + $0x50] sm:$0xff]
    %v98 = vld [vmem:[#allocation5 + $0x58] sm:$0xff]
    %v99 = vld [vmem:[#allocation5 + $0x60] sm:$0xff]
    %v100 = vld [vmem:[#allocation5 + $0x68] sm:$0xff]
    %v101 = vld [vmem:[#allocation5 + $0x70] sm:$0xff]
    %v102 = vld [vmem:[#allocation5 + $0x78] sm:$0xff]
    %v103 = vld [vmem:[#allocation5 + $0x80] sm:$0xff]
    %v104 = vld [vmem:[#allocation5 + $0x88] sm:$0xff]
    %v105 = vld [vmem:[#allocation5 + $0x90] sm:$0xff]
    %v106 = vld [vmem:[#allocation5 + $0x98] sm:$0xff]
    %v107 = vld [vmem:[#allocation5 + $0xa0] sm:$0xff]
    %v108 = vld [vmem:[#allocation5 + $0xa8] sm:$0xff]
    %v109 = vld [vmem:[#allocation5 + $0xb0] sm:$0xff]
    %v110 = vld [vmem:[#allocation5 + $0xb8] sm:$0xff]
    %v111 = vld [vmem:[#allocation5 + $0xc0] sm:$0xff]
    %v112 = vld [vmem:[#allocation5 + $0xc8] sm:$0xff]
    %v113 = vld [vmem:[#allocation5 + $0xd0] sm:$0xff]
    %v114 = vld [vmem:[#allocation5 + $0xd8] sm:$0xff]
    %v115 = vld [vmem:[#allocation5 + $0xe0] sm:$0xff]
    %v116 = vld [vmem:[#allocation5 + $0xe8] sm:$0xff]
    %v117 = vld [vmem:[#allocation5 + $0xf0] sm:$0xff]
    %v118 = vld [vmem:[#allocation5 + $0xf8] sm:$0xff]
    %v119 = vld [vmem:[#allocation5 + $0x100] sm:$0xff]
    %v120 = vld [vmem:[#allocation5 + $0x108] sm:$0xff]
    %v121 = vld [vmem:[#allocation5 + $0x110] sm:$0xff]
    %v122 = vld [vmem:[#allocation5 + $0x118] sm:$0xff]
    %v123 = vld [vmem:[#allocation5 + $0x120] sm:$0xff]
    %v124 = vld [vmem:[#allocation5 + $0x128] sm:$0xff]
    %v125 = vld [vmem:[#allocation5 + $0x130] sm:$0xff]
    %v126 = vld [vmem:[#allocation5 + $0x138] sm:$0xff]
    %v127 = vld [vmem:[#allocation5 + $0x140] sm:$0xff]
    %v128 = vld [vmem:[#allocation5 + $0x148] sm:$0xff]
    %v129 = vld [vmem:[#allocation5 + $0x150] sm:$0xff]
    %v130 = vld [vmem:[#allocation5 + $0x158] sm:$0xff]
    %v131 = vld [vmem:[#allocation5 + $0x160] sm:$0xff]
    %v132 = vld [vmem:[#allocation5 + $0x168] sm:$0xff]
    %v133 = vld [vmem:[#allocation5 + $0x170] sm:$0xff]
    %v134 = vld [vmem:[#allocation5 + $0x178] sm:$0xff]
    %v135 = vld [vmem:[#allocation5 + $0x180] sm:$0xff]
    %v136 = vld [vmem:[#allocation5 + $0x188] sm:$0xff]
    %v137 = vld [vmem:[#allocation5 + $0x190] sm:$0xff]
    %v138 = vld [vmem:[#allocation5 + $0x198] sm:$0xff]
    %v139 = vld [vmem:[#allocation5 + $0x1a0] sm:$0xff]
    %v140 = vld [vmem:[#allocation5 + $0x1a8] sm:$0xff]
    %v141 = vld [vmem:[#allocation5 + $0x1b0] sm:$0xff]
    %v142 = vld [vmem:[#allocation5 + $0x1b8] sm:$0xff]
    %v143 = vld [vmem:[#allocation5 + $0x1c0] sm:$0xff]
    %v144 = vld [vmem:[#allocation5 + $0x1c8] sm:$0xff]
    %v145 = vld [vmem:[#allocation5 + $0x1d0] sm:$0xff]
    %v146 = vld [vmem:[#allocation5 + $0x1d8] sm:$0xff]
    %v147 = vld [vmem:[#allocation5 + $0x1e0] sm:$0xff]
    %v148 = vld [vmem:[#allocation5 + $0x1e8] sm:$0xff]
    %v149 = vld [vmem:[#allocation5 + $0x1f0] sm:$0xff]
    %v150 = vld [vmem:[#allocation5 + $0x1f8] sm:$0xff]
    %v151 = vld [vmem:[%s2] sm:$0xf]
    %v153 = vlaneseq
    %v154 = vshrl.u32 %v153, 7
    %v155 = vsub.s32 0, %v154
    %v156 = vrot.slane %v151, %v155
    %v157 = vlaneseq
    %v158 = vshrl.u32 %v157, 7
    %v159 = vsub.s32 1, %v158
    %v160 = vrot.slane %v151, %v159
    %v161 = vlaneseq
    %v162 = vshrl.u32 %v161, 7
    %v163 = vsub.s32 2, %v162
    %v164 = vrot.slane %v151, %v163
    %v165 = vlaneseq
    %v166 = vshrl.u32 %v165, 7
    %v167 = vsub.s32 3, %v166
    %v168 = vrot.slane %v151, %v167
    %173 = vmatprep.subr.mxu0 %v88
    %174 = vmatpush1.msra.mxu0 %v87
    %175 = vmatprep.subr.mxu0 %v92
    %176 = vmatpush1.msra.mxu0 %v91
    %177 = vmatprep.subr.mxu0 %v96
    %178 = vmatpush1.msra.mxu0 %v95
    %179 = vmatprep.subr.mxu0 %v100
    %180 = vmatpush1.msra.mxu0 %v99
    %181 = vmatprep.subr.mxu0 %v104
    %182 = vmatpush1.msra.mxu0 %v103
    %183 = vmatprep.subr.mxu0 %v108
    %184 = vmatpush1.msra.mxu0 %v107
    %185 = vmatprep.subr.mxu0 %v112
    %186 = vmatpush1.msra.mxu0 %v111
    %187 = vmatprep.subr.mxu0 %v116
    %188 = vmatpush1.msra.mxu0 %v115
    %189 = vmatprep.subr.mxu0 %v120
    %190 = vmatpush1.msra.mxu0 %v119
    %191 = vmatprep.subr.mxu0 %v124
    %192 = vmatpush1.msra.mxu0 %v123
    %193 = vmatprep.subr.mxu0 %v128
    %194 = vmatpush1.msra.mxu0 %v127
    %195 = vmatprep.subr.mxu0 %v132
    %196 = vmatpush1.msra.mxu0 %v131
    %197 = vmatprep.subr.mxu0 %v136
    %198 = vmatpush1.msra.mxu0 %v135
    %199 = vmatprep.subr.mxu0 %v140
    %200 = vmatpush1.msra.mxu0 %v139
    %201 = vmatprep.subr.mxu0 %v144
    %202 = vmatpush1.msra.mxu0 %v143
    %203 = vmatprep.subr.mxu0 %v148
    %204 = vmatpush1.msra.mxu0 %v147
    %205 = vmatprep.subr.mxu0 0.0
    %206 = vmatpush1.msra.mxu0 0.0
    %207 = vmatprep.subr.mxu0 0.0
    %208 = vmatpush1.msra.mxu0 0.0
    %209 = vmatprep.subr.mxu0 0.0
    %210 = vmatpush1.msra.mxu0 0.0
    %211 = vmatprep.subr.mxu0 0.0
    %212 = vmatpush1.msra.mxu0 0.0
    %213 = vmatprep.subr.mxu0 0.0
    %214 = vmatpush1.msra.mxu0 0.0
    %215 = vmatprep.subr.mxu0 0.0
    %216 = vmatpush1.msra.mxu0 0.0
    %217 = vmatprep.subr.mxu0 0.0
    %218 = vmatpush1.msra.mxu0 0.0
    %219 = vmatprep.subr.mxu0 0.0
    %220 = vmatpush1.msra.mxu0 0.0
    %221 = vmatprep.subr.mxu0 0.0
    %222 = vmatpush1.msra.mxu0 0.0
    %223 = vmatprep.subr.mxu0 0.0
    %224 = vmatpush1.msra.mxu0 0.0
    %225 = vmatprep.subr.mxu0 0.0
    %226 = vmatpush1.msra.mxu0 0.0
    %227 = vmatprep.subr.mxu0 0.0
    %228 = vmatpush1.msra.mxu0 0.0
    %229 = vmatprep.subr.mxu0 0.0
    %230 = vmatpush1.msra.mxu0 0.0
    %231 = vmatprep.subr.mxu0 0.0
    %232 = vmatpush1.msra.mxu0 0.0
    %233 = vmatprep.subr.mxu0 0.0
    %234 = vmatpush1.msra.mxu0 0.0
    %235 = vmatprep.subr.mxu0 0.0
    %236 = vmatpush1.msra.mxu0 0.0
    %237 = vmatprep.mubr.f32.mxu0 0.0
    %238 = vmatmul.mubr.f32.gmra.mrb[0].mxu0 %v82
    %v239 = vpop.f32.mrb[0].mxu0
    %v240 = vadd.f32 %v156, %v239
    %v241 = vpop.f32.mrb[0].mxu0
    %v242 = vadd.f32 %v160, %v241
    %243 = vmatprep.mubr.f32.mxu0 0.0
    %244 = vmatmul.mubr.f32.gmra.mrb[0].mxu0 %v83
    %v245 = vpop.f32.mrb[0].mxu0
    %v246 = vadd.f32 %v156, %v245
    %v247 = vpop.f32.mrb[0].mxu0
    %v248 = vadd.f32 %v160, %v247
    %249 = vmatprep.mubr.f32.mxu0 0.0
    %250 = vmatmul.mubr.f32.gmra.mrb[0].mxu0 %v84
    %v251 = vpop.f32.mrb[0].mxu0
    %v252 = vadd.f32 %v156, %v251
    %v253 = vpop.f32.mrb[0].mxu0
    %v254 = vadd.f32 %v160, %v253
    %255 = vmatprep.mubr.f32.mxu0 0.0
    %256 = vmatmul.mubr.f32.gmra.mrb[0].mxu0 %v85
    %v257 = vpop.f32.mrb[0].mxu0
    %v258 = vadd.f32 %v156, %v257
    %v259 = vpop.f32.mrb[0].mxu0
    %v260 = vadd.f32 %v160, %v259
    %261 = vmatprep.mubr.f32.mxu0 0.0
    %262 = vmatmul.mubr.f32.gmra.mrb[0].mxu0 %v86
    %v263 = vpop.f32.mrb[0].mxu0
    %v264 = vadd.f32 %v156, %v263
    %v265 = vpop.f32.mrb[0].mxu0
    %v266 = vadd.f32 %v160, %v265
    %267 = vdwg.mxu0
    %268 = vmatprep.subr.mxu0 %v90
    %269 = vmatpush1.msra.mxu0 %v89
    %270 = vmatprep.subr.mxu0 %v94
    %271 = vmatpush1.msra.mxu0 %v93
    %272 = vmatprep.subr.mxu0 %v98
    %273 = vmatpush1.msra.mxu0 %v97
    %274 = vmatprep.subr.mxu0 %v102
    %275 = vmatpush1.msra.mxu0 %v101
    %276 = vmatprep.subr.mxu0 %v106
    %277 = vmatpush1.msra.mxu0 %v105
    %278 = vmatprep.subr.mxu0 %v110
    %279 = vmatpush1.msra.mxu0 %v109
    %280 = vmatprep.subr.mxu0 %v114
    %281 = vmatpush1.msra.mxu0 %v113
    %282 = vmatprep.subr.mxu0 %v118
    %283 = vmatpush1.msra.mxu0 %v117
    %284 = vmatprep.subr.mxu0 %v122
    %285 = vmatpush1.msra.mxu0 %v121
    %286 = vmatprep.subr.mxu0 %v126
    %287 = vmatpush1.msra.mxu0 %v125
    %288 = vmatprep.subr.mxu0 %v130
    %289 = vmatpush1.msra.mxu0 %v129
    %290 = vmatprep.subr.mxu0 %v134
    %291 = vmatpush1.msra.mxu0 %v133
    %292 = vmatprep.subr.mxu0 %v138
    %293 = vmatpush1.msra.mxu0 %v137
    %294 = vmatprep.subr.mxu0 %v142
    %295 = vmatpush1.msra.mxu0 %v141
    %296 = vmatprep.subr.mxu0 %v146
    %297 = vmatpush1.msra.mxu0 %v145
    %298 = vmatprep.subr.mxu0 %v150
    %299 = vmatpush1.msra.mxu0 %v149
    %300 = vmatprep.subr.mxu0 0.0
    %301 = vmatpush1.msra.mxu0 0.0
    %302 = vmatprep.subr.mxu0 0.0
    %303 = vmatpush1.msra.mxu0 0.0
    %304 = vmatprep.subr.mxu0 0.0
    %305 = vmatpush1.msra.mxu0 0.0
    %306 = vmatprep.subr.mxu0 0.0
    %307 = vmatpush1.msra.mxu0 0.0
    %308 = vmatprep.subr.mxu0 0.0
    %309 = vmatpush1.msra.mxu0 0.0
    %310 = vmatprep.subr.mxu0 0.0
    %311 = vmatpush1.msra.mxu0 0.0
    %312 = vmatprep.subr.mxu0 0.0
    %313 = vmatpush1.msra.mxu0 0.0
    %314 = vmatprep.subr.mxu0 0.0
    %315 = vmatpush1.msra.mxu0 0.0
    %316 = vmatprep.subr.mxu0 0.0
    %317 = vmatpush1.msra.mxu0 0.0
    %318 = vmatprep.subr.mxu0 0.0
    %319 = vmatpush1.msra.mxu0 0.0
    %320 = vmatprep.subr.mxu0 0.0
    %321 = vmatpush1.msra.mxu0 0.0
    %322 = vmatprep.subr.mxu0 0.0
    %323 = vmatpush1.msra.mxu0 0.0
    %324 = vmatprep.subr.mxu0 0.0
    %325 = vmatpush1.msra.mxu0 0.0
    %326 = vmatprep.subr.mxu0 0.0
    %327 = vmatpush1.msra.mxu0 0.0
    %328 = vmatprep.subr.mxu0 0.0
    %329 = vmatpush1.msra.mxu0 0.0
    %330 = vmatprep.subr.mxu0 0.0
    %331 = vmatpush1.msra.mxu0 0.0
    %332 = vmatprep.mubr.f32.mxu0 0.0
    %333 = vmatmul.mubr.f32.gmra.mrb[0].mxu0 %v82
    %v334 = vpop.f32.mrb[0].mxu0
    %v335 = vadd.f32 %v164, %v334
    %v336 = vpop.f32.mrb[0].mxu0
    %v337 = vadd.f32 %v168, %v336
    %338 = vmatprep.mubr.f32.mxu0 0.0
    %339 = vmatmul.mubr.f32.gmra.mrb[0].mxu0 %v83
    %v340 = vpop.f32.mrb[0].mxu0
    %v341 = vadd.f32 %v164, %v340
    %v342 = vpop.f32.mrb[0].mxu0
    %v343 = vadd.f32 %v168, %v342
    %344 = vmatprep.mubr.f32.mxu0 0.0
    %345 = vmatmul.mubr.f32.gmra.mrb[0].mxu0 %v84
    %v346 = vpop.f32.mrb[0].mxu0
    %v347 = vadd.f32 %v164, %v346
    %v348 = vpop.f32.mrb[0].mxu0
    %v349 = vadd.f32 %v168, %v348
    %350 = vmatprep.mubr.f32.mxu0 0.0
    %351 = vmatmul.mubr.f32.gmra.mrb[0].mxu0 %v85
    %v352 = vpop.f32.mrb[0].mxu0
    %v353 = vadd.f32 %v164, %v352
    %v354 = vpop.f32.mrb[0].mxu0
    %v355 = vadd.f32 %v168, %v354
    %356 = vmatprep.mubr.f32.mxu0 0.0
    %357 = vmatmul.mubr.f32.gmra.mrb[0].mxu0 %v86
    %v358 = vpop.f32.mrb[0].mxu0
    %v359 = vadd.f32 %v164, %v358
    %v360 = vpop.f32.mrb[0].mxu0
    %v361 = vadd.f32 %v168, %v360
    %362 = vdwg.mxu0
    %v363 = vmax.f32 %v240, 0.0
    %v364 = vmax.f32 %v242, 0.0
    %v365 = vmax.f32 %v335, 0.0
    %v366 = vmax.f32 %v337, 0.0
    %v367 = vmax.f32 %v246, 0.0
    %v368 = vmax.f32 %v248, 0.0
    %v369 = vmax.f32 %v341, 0.0
    %v370 = vmax.f32 %v343, 0.0
    %v371 = vmax.f32 %v252, 0.0
    %v372 = vmax.f32 %v254, 0.0
    %v373 = vmax.f32 %v347, 0.0
    %v374 = vmax.f32 %v349, 0.0
    %v375 = vmax.f32 %v258, 0.0
    %v376 = vmax.f32 %v260, 0.0
    %v377 = vmax.f32 %v353, 0.0
    %v378 = vmax.f32 %v355, 0.0
    %v379 = vmax.f32 %v264, 0.0
    %v380 = vmax.f32 %v266, 0.0
    %v381 = vmax.f32 %v359, 0.0
    %v382 = vmax.f32 %v361, 0.0
    %v383 = vld [vmem:[#allocation7] sm:$0xff]
    %v384 = vld [vmem:[#allocation7 + $0x8] sm:$0xff]
    %v385 = vld [vmem:[#allocation7 + $0x10] sm:$0xff]
    %v386 = vld [vmem:[#allocation7 + $0x18] sm:$0xff]
    %v387 = vld [vmem:[#allocation7 + $0x20] sm:$0xff]
    %v388 = vld [vmem:[#allocation7 + $0x28] sm:$0xff]
    %v389 = vld [vmem:[#allocation7 + $0x30] sm:$0xff]
    %v390 = vld [vmem:[#allocation7 + $0x38] sm:$0xff]
    %v391 = vld [vmem:[#allocation7 + $0x40] sm:$0xff]
    %v392 = vld [vmem:[#allocation7 + $0x48] sm:$0xff]
    %v393 = vld [vmem:[#allocation7 + $0x50] sm:$0xff]
    %v394 = vld [vmem:[#allocation7 + $0x58] sm:$0xff]
    %v395 = vld [vmem:[#allocation7 + $0x60] sm:$0xff]
    %v396 = vld [vmem:[#allocation7 + $0x68] sm:$0xff]
    %v397 = vld [vmem:[#allocation7 + $0x70] sm:$0xff]
    %v398 = vld [vmem:[#allocation7 + $0x78] sm:$0xff]
    %v399 = vld [vmem:[#allocation7 + $0x80] sm:$0xff]
    %v400 = vld [vmem:[#allocation7 + $0x88] sm:$0xff]
    %v401 = vld [vmem:[#allocation7 + $0x90] sm:$0xff]
    %v402 = vld [vmem:[#allocation7 + $0x98] sm:$0xff]
    %v403 = vld [vmem:[#allocation7 + $0xa0] sm:$0xff]
    %v404 = vld [vmem:[#allocation7 + $0xa8] sm:$0xff]
    %v405 = vld [vmem:[#allocation7 + $0xb0] sm:$0xff]
    %v406 = vld [vmem:[#allocation7 + $0xb8] sm:$0xff]
    %v407 = vld [vmem:[#allocation7 + $0xc0] sm:$0xff]
    %v408 = vld [vmem:[#allocation7 + $0xc8] sm:$0xff]
    %v409 = vld [vmem:[#allocation7 + $0xd0] sm:$0xff]
    %v410 = vld [vmem:[#allocation7 + $0xd8] sm:$0xff]
    %v411 = vld [vmem:[#allocation7 + $0xe0] sm:$0xff]
    %v412 = vld [vmem:[#allocation7 + $0xe8] sm:$0xff]
    %v413 = vld [vmem:[#allocation7 + $0xf0] sm:$0xff]
    %v414 = vld [vmem:[#allocation7 + $0xf8] sm:$0xff]
    %v415 = vld [vmem:[#allocation7 + $0x100] sm:$0xff]
    %v416 = vld [vmem:[#allocation7 + $0x108] sm:$0xff]
    %v417 = vld [vmem:[#allocation7 + $0x110] sm:$0xff]
    %v418 = vld [vmem:[#allocation7 + $0x118] sm:$0xff]
    %v419 = vld [vmem:[#allocation7 + $0x120] sm:$0xff]
    %v420 = vld [vmem:[#allocation7 + $0x128] sm:$0xff]
    %v421 = vld [vmem:[#allocation7 + $0x130] sm:$0xff]
    %v422 = vld [vmem:[#allocation7 + $0x138] sm:$0xff]
    %v423 = vld [vmem:[#allocation7 + $0x140] sm:$0xff]
    %v424 = vld [vmem:[#allocation7 + $0x148] sm:$0xff]
    %v425 = vld [vmem:[#allocation7 + $0x150] sm:$0xff]
    %v426 = vld [vmem:[#allocation7 + $0x158] sm:$0xff]
    %v427 = vld [vmem:[#allocation7 + $0x160] sm:$0xff]
    %v428 = vld [vmem:[#allocation7 + $0x168] sm:$0xff]
    %v429 = vld [vmem:[#allocation7 + $0x170] sm:$0xff]
    %v430 = vld [vmem:[#allocation7 + $0x178] sm:$0xff]
    %v431 = vld [vmem:[#allocation7 + $0x180] sm:$0xff]
    %v432 = vld [vmem:[#allocation7 + $0x188] sm:$0xff]
    %v433 = vld [vmem:[#allocation7 + $0x190] sm:$0xff]
    %v434 = vld [vmem:[#allocation7 + $0x198] sm:$0xff]
    %v435 = vld [vmem:[#allocation7 + $0x1a0] sm:$0xff]
    %v436 = vld [vmem:[#allocation7 + $0x1a8] sm:$0xff]
    %v437 = vld [vmem:[#allocation7 + $0x1b0] sm:$0xff]
    %v438 = vld [vmem:[#allocation7 + $0x1b8] sm:$0xff]
    %v439 = vld [vmem:[#allocation7 + $0x1c0] sm:$0xff]
    %v440 = vld [vmem:[#allocation7 + $0x1c8] sm:$0xff]
    %v441 = vld [vmem:[#allocation7 + $0x1d0] sm:$0xff]
    %v442 = vld [vmem:[#allocation7 + $0x1d8] sm:$0xff]
    %v443 = vld [vmem:[#allocation7 + $0x1e0] sm:$0xff]
    %v444 = vld [vmem:[#allocation7 + $0x1e8] sm:$0xff]
    %v445 = vld [vmem:[#allocation7 + $0x1f0] sm:$0xff]
    %v446 = vld [vmem:[#allocation7 + $0x1f8] sm:$0xff]
    %v447 = vld [vmem:[%s4] sm:$0x1]
    %v449 = vlaneseq
    %v450 = vshrl.u32 %v449, 7
    %v451 = vsub.s32 0, %v450
    %v452 = vrot.slane %v447, %v451
    %454 = vmatprep.subr.mxu0 0.0
    %455 = vmatpush1.msra.mxu0 %v383
    %456 = vmatprep.subr.mxu0 0.0
    %457 = vmatpush1.msra.mxu0 %v384
    %458 = vmatprep.subr.mxu0 0.0
    %459 = vmatpush1.msra.mxu0 %v385
    %460 = vmatprep.subr.mxu0 0.0
    %461 = vmatpush1.msra.mxu0 %v386
    %462 = vmatprep.subr.mxu0 0.0
    %463 = vmatpush1.msra.mxu0 %v387
    %464 = vmatprep.subr.mxu0 0.0
    %465 = vmatpush1.msra.mxu0 %v388
    %466 = vmatprep.subr.mxu0 0.0
    %467 = vmatpush1.msra.mxu0 %v389
    %468 = vmatprep.subr.mxu0 0.0
    %469 = vmatpush1.msra.mxu0 %v390
    %470 = vmatprep.subr.mxu0 0.0
    %471 = vmatpush1.msra.mxu0 %v391
    %472 = vmatprep.subr.mxu0 0.0
    %473 = vmatpush1.msra.mxu0 %v392
    %474 = vmatprep.subr.mxu0 0.0
    %475 = vmatpush1.msra.mxu0 %v393
    %476 = vmatprep.subr.mxu0 0.0
    %477 = vmatpush1.msra.mxu0 %v394
    %478 = vmatprep.subr.mxu0 0.0
    %479 = vmatpush1.msra.mxu0 %v395
    %480 = vmatprep.subr.mxu0 0.0
    %481 = vmatpush1.msra.mxu0 %v396
    %482 = vmatprep.subr.mxu0 0.0
    %483 = vmatpush1.msra.mxu0 %v397
    %484 = vmatprep.subr.mxu0 0.0
    %485 = vmatpush1.msra.mxu0 %v398
    %486 = vmatprep.subr.mxu0 0.0
    %487 = vmatpush1.msra.mxu0 %v399
    %488 = vmatprep.subr.mxu0 0.0
    %489 = vmatpush1.msra.mxu0 %v400
    %490 = vmatprep.subr.mxu0 0.0
    %491 = vmatpush1.msra.mxu0 %v401
    %492 = vmatprep.subr.mxu0 0.0
    %493 = vmatpush1.msra.mxu0 %v402
    %494 = vmatprep.subr.mxu0 0.0
    %495 = vmatpush1.msra.mxu0 %v403
    %496 = vmatprep.subr.mxu0 0.0
    %497 = vmatpush1.msra.mxu0 %v404
    %498 = vmatprep.subr.mxu0 0.0
    %499 = vmatpush1.msra.mxu0 %v405
    %500 = vmatprep.subr.mxu0 0.0
    %501 = vmatpush1.msra.mxu0 %v406
    %502 = vmatprep.subr.mxu0 0.0
    %503 = vmatpush1.msra.mxu0 %v407
    %504 = vmatprep.subr.mxu0 0.0
    %505 = vmatpush1.msra.mxu0 %v408
    %506 = vmatprep.subr.mxu0 0.0
    %507 = vmatpush1.msra.mxu0 %v409
    %508 = vmatprep.subr.mxu0 0.0
    %509 = vmatpush1.msra.mxu0 %v410
    %510 = vmatprep.subr.mxu0 0.0
    %511 = vmatpush1.msra.mxu0 %v411
    %512 = vmatprep.subr.mxu0 0.0
    %513 = vmatpush1.msra.mxu0 %v412
    %514 = vmatprep.subr.mxu0 0.0
    %515 = vmatpush1.msra.mxu0 %v413
    %516 = vmatprep.subr.mxu0 0.0
    %517 = vmatpush1.msra.mxu0 %v414
    %518 = vmatprep.mubr.f32.mxu0 %v364
    %519 = vmatmul.mubr.f32.gmra.mrb[0].mxu0 %v363
    %v520 = vpop.f32.mrb[0].mxu0
    %v521 = vadd.f32 %v452, %v520
    %v522 = vpop.f32.mrb[0].mxu0
    %523 = vmatprep.mubr.f32.mxu0 %v368
    %524 = vmatmul.mubr.f32.gmra.mrb[0].mxu0 %v367
    %v525 = vpop.f32.mrb[0].mxu0
    %v526 = vadd.f32 %v452, %v525
    %v527 = vpop.f32.mrb[0].mxu0
    %528 = vmatprep.mubr.f32.mxu0 %v372
    %529 = vmatmul.mubr.f32.gmra.mrb[0].mxu0 %v371
    %v530 = vpop.f32.mrb[0].mxu0
    %v531 = vadd.f32 %v452, %v530
    %v532 = vpop.f32.mrb[0].mxu0
    %533 = vmatprep.mubr.f32.mxu0 %v376
    %534 = vmatmul.mubr.f32.gmra.mrb[0].mxu0 %v375
    %v535 = vpop.f32.mrb[0].mxu0
    %v536 = vadd.f32 %v452, %v535
    %v537 = vpop.f32.mrb[0].mxu0
    %538 = vmatprep.mubr.f32.mxu0 %v380
    %539 = vmatmul.mubr.f32.gmra.mrb[0].mxu0 %v379
    %v540 = vpop.f32.mrb[0].mxu0
    %v541 = vadd.f32 %v452, %v540
    %v542 = vpop.f32.mrb[0].mxu0
    %543 = vdwg.mxu0
    %544 = vmatprep.subr.mxu0 0.0
    %545 = vmatpush1.msra.mxu0 %v415
    %546 = vmatprep.subr.mxu0 0.0
    %547 = vmatpush1.msra.mxu0 %v416
    %548 = vmatprep.subr.mxu0 0.0
    %549 = vmatpush1.msra.mxu0 %v417
    %550 = vmatprep.subr.mxu0 0.0
    %551 = vmatpush1.msra.mxu0 %v418
    %552 = vmatprep.subr.mxu0 0.0
    %553 = vmatpush1.msra.mxu0 %v419
    %554 = vmatprep.subr.mxu0 0.0
    %555 = vmatpush1.msra.mxu0 %v420
    %556 = vmatprep.subr.mxu0 0.0
    %557 = vmatpush1.msra.mxu0 %v421
    %558 = vmatprep.subr.mxu0 0.0
    %559 = vmatpush1.msra.mxu0 %v422
    %560 = vmatprep.subr.mxu0 0.0
    %561 = vmatpush1.msra.mxu0 %v423
    %562 = vmatprep.subr.mxu0 0.0
    %563 = vmatpush1.msra.mxu0 %v424
    %564 = vmatprep.subr.mxu0 0.0
    %565 = vmatpush1.msra.mxu0 %v425
    %566 = vmatprep.subr.mxu0 0.0
    %567 = vmatpush1.msra.mxu0 %v426
    %568 = vmatprep.subr.mxu0 0.0
    %569 = vmatpush1.msra.mxu0 %v427
    %570 = vmatprep.subr.mxu0 0.0
    %571 = vmatpush1.msra.mxu0 %v428
    %572 = vmatprep.subr.mxu0 0.0
    %573 = vmatpush1.msra.mxu0 %v429
    %574 = vmatprep.subr.mxu0 0.0
    %575 = vmatpush1.msra.mxu0 %v430
    %576 = vmatprep.subr.mxu0 0.0
    %577 = vmatpush1.msra.mxu0 %v431
    %578 = vmatprep.subr.mxu0 0.0
    %579 = vmatpush1.msra.mxu0 %v432
    %580 = vmatprep.subr.mxu0 0.0
    %581 = vmatpush1.msra.mxu0 %v433
    %582 = vmatprep.subr.mxu0 0.0
    %583 = vmatpush1.msra.mxu0 %v434
    %584 = vmatprep.subr.mxu0 0.0
    %585 = vmatpush1.msra.mxu0 %v435
    %586 = vmatprep.subr.mxu0 0.0
    %587 = vmatpush1.msra.mxu0 %v436
    %588 = vmatprep.subr.mxu0 0.0
    %589 = vmatpush1.msra.mxu0 %v437
    %590 = vmatprep.subr.mxu0 0.0
    %591 = vmatpush1.msra.mxu0 %v438
    %592 = vmatprep.subr.mxu0 0.0
    %593 = vmatpush1.msra.mxu0 %v439
    %594 = vmatprep.subr.mxu0 0.0
    %595 = vmatpush1.msra.mxu0 %v440
    %596 = vmatprep.subr.mxu0 0.0
    %597 = vmatpush1.msra.mxu0 %v441
    %598 = vmatprep.subr.mxu0 0.0
    %599 = vmatpush1.msra.mxu0 %v442
    %600 = vmatprep.subr.mxu0 0.0
    %601 = vmatpush1.msra.mxu0 %v443
    %602 = vmatprep.subr.mxu0 0.0
    %603 = vmatpush1.msra.mxu0 %v444
    %604 = vmatprep.subr.mxu0 0.0
    %605 = vmatpush1.msra.mxu0 %v445
    %606 = vmatprep.subr.mxu0 0.0
    %607 = vmatpush1.msra.mxu0 %v446
    %608 = vmatprep.mubr.f32.mxu0 %v366
    %609 = vmatmul.mubr.f32.gmra.mrb[0].mxu0 %v365
    %v610 = vpop.f32.mrb[0].mxu0
    %v611 = vadd.f32 %v521, %v610
    %v612 = vpop.f32.mrb[0].mxu0
    %613 = vmatprep.mubr.f32.mxu0 %v370
    %614 = vmatmul.mubr.f32.gmra.mrb[0].mxu0 %v369
    %v615 = vpop.f32.mrb[0].mxu0
    %v616 = vadd.f32 %v526, %v615
    %v617 = vpop.f32.mrb[0].mxu0
    %618 = vmatprep.mubr.f32.mxu0 %v374
    %619 = vmatmul.mubr.f32.gmra.mrb[0].mxu0 %v373
    %v620 = vpop.f32.mrb[0].mxu0
    %v621 = vadd.f32 %v531, %v620
    %v622 = vpop.f32.mrb[0].mxu0
    %623 = vmatprep.mubr.f32.mxu0 %v378
    %624 = vmatmul.mubr.f32.gmra.mrb[0].mxu0 %v377
    %v625 = vpop.f32.mrb[0].mxu0
    %v626 = vadd.f32 %v536, %v625
    %v627 = vpop.f32.mrb[0].mxu0
    %628 = vmatprep.mubr.f32.mxu0 %v382
    %629 = vmatmul.mubr.f32.gmra.mrb[0].mxu0 %v381
    %v630 = vpop.f32.mrb[0].mxu0
    %v631 = vadd.f32 %v541, %v630
    %v632 = vpop.f32.mrb[0].mxu0
    %633 = vdwg.mxu0
    %v634 = vmax.f32 %v611, 0.0
    %v635 = vmax.f32 %v616, 0.0
    %v636 = vmax.f32 %v621, 0.0
    %v637 = vmax.f32 %v626, 0.0
    %v638 = vmax.f32 %v631, 0.0
    %v639 = vld [vmem:[#allocation8] sm:$0xff]
    %v640 = vld [vmem:[#allocation8 + $0x8] sm:$0xff]
    %v641 = vld [vmem:[#allocation8 + $0x10] sm:$0xff]
    %v642 = vld [vmem:[#allocation8 + $0x18] sm:$0xff]
    %v643 = vld [vmem:[#allocation8 + $0x20] sm:$0xff]
    %v644 = vld [vmem:[#allocation8 + $0x28] sm:$0xff]
    %v645 = vld [vmem:[#allocation8 + $0x30] sm:$0xff]
    %v646 = vld [vmem:[#allocation8 + $0x38] sm:$0xff]
    %v647 = vld [vmem:[#allocation8 + $0x40] sm:$0xff]
    %v648 = vld [vmem:[#allocation8 + $0x48] sm:$0xff]
    %v649 = vld [vmem:[#allocation8 + $0x50] sm:$0xff]
    %v650 = vld [vmem:[#allocation8 + $0x58] sm:$0xff]
    %v651 = vld [vmem:[#allocation8 + $0x60] sm:$0xff]
    %v652 = vld [vmem:[#allocation8 + $0x68] sm:$0xff]
    %v653 = vld [vmem:[#allocation8 + $0x70] sm:$0xff]
    %v654 = vld [vmem:[#allocation8 + $0x78] sm:$0xff]
    %v655 = vld [vmem:[%s6] sm:$0x1]
    %v657 = vlaneseq
    %v658 = vshrl.u32 %v657, 7
    %v659 = vsub.s32 0, %v658
    %v660 = vrot.slane %v655, %v659
    %662 = vmatprep.subr.mxu0 0.0
    %663 = vmatpush1.msra.mxu0 %v639
    %664 = vmatprep.subr.mxu0 0.0
    %665 = vmatpush1.msra.mxu0 %v640
    %666 = vmatprep.subr.mxu0 0.0
    %667 = vmatpush1.msra.mxu0 %v641
    %668 = vmatprep.subr.mxu0 0.0
    %669 = vmatpush1.msra.mxu0 %v642
    %670 = vmatprep.subr.mxu0 0.0
    %671 = vmatpush1.msra.mxu0 %v643
    %672 = vmatprep.subr.mxu0 0.0
    %673 = vmatpush1.msra.mxu0 %v644
    %674 = vmatprep.subr.mxu0 0.0
    %675 = vmatpush1.msra.mxu0 %v645
    %676 = vmatprep.subr.mxu0 0.0
    %677 = vmatpush1.msra.mxu0 %v646
    %678 = vmatprep.subr.mxu0 0.0
    %679 = vmatpush1.msra.mxu0 %v647
    %680 = vmatprep.subr.mxu0 0.0
    %681 = vmatpush1.msra.mxu0 %v648
    %682 = vmatprep.subr.mxu0 0.0
    %683 = vmatpush1.msra.mxu0 %v649
    %684 = vmatprep.subr.mxu0 0.0
    %685 = vmatpush1.msra.mxu0 %v650
    %686 = vmatprep.subr.mxu0 0.0
    %687 = vmatpush1.msra.mxu0 %v651
    %688 = vmatprep.subr.mxu0 0.0
    %689 = vmatpush1.msra.mxu0 %v652
    %690 = vmatprep.subr.mxu0 0.0
    %691 = vmatpush1.msra.mxu0 %v653
    %692 = vmatprep.subr.mxu0 0.0
    %693 = vmatpush1.msra.mxu0 %v654
    %694 = vmatprep.subr.mxu0 0.0
    %695 = vmatpush1.msra.mxu0 0.0
    %696 = vmatprep.subr.mxu0 0.0
    %697 = vmatpush1.msra.mxu0 0.0
    %698 = vmatprep.subr.mxu0 0.0
    %699 = vmatpush1.msra.mxu0 0.0
    %700 = vmatprep.subr.mxu0 0.0
    %701 = vmatpush1.msra.mxu0 0.0
    %702 = vmatprep.subr.mxu0 0.0
    %703 = vmatpush1.msra.mxu0 0.0
    %704 = vmatprep.subr.mxu0 0.0
    %705 = vmatpush1.msra.mxu0 0.0
    %706 = vmatprep.subr.mxu0 0.0
    %707 = vmatpush1.msra.mxu0 0.0
    %708 = vmatprep.subr.mxu0 0.0
    %709 = vmatpush1.msra.mxu0 0.0
    %710 = vmatprep.subr.mxu0 0.0
    %711 = vmatpush1.msra.mxu0 0.0
    %712 = vmatprep.subr.mxu0 0.0
    %713 = vmatpush1.msra.mxu0 0.0
    %714 = vmatprep.subr.mxu0 0.0
    %715 = vmatpush1.msra.mxu0 0.0
    %716 = vmatprep.subr.mxu0 0.0
    %717 = vmatpush1.msra.mxu0 0.0
    %718 = vmatprep.subr.mxu0 0.0
    %719 = vmatpush1.msra.mxu0 0.0
    %720 = vmatprep.subr.mxu0 0.0
    %721 = vmatpush1.msra.mxu0 0.0
    %722 = vmatprep.subr.mxu0 0.0
    %723 = vmatpush1.msra.mxu0 0.0
    %724 = vmatprep.subr.mxu0 0.0
    %725 = vmatpush1.msra.mxu0 0.0
    %726 = vmatprep.mubr.f32.mxu0 0.0
    %727 = vmatmul.mubr.f32.gmra.mrb[0].mxu0 %v634
    %v728 = vpop.f32.mrb[0].mxu0
    %v729 = vadd.f32 %v660, %v728
    %v730 = vpop.f32.mrb[0].mxu0
    %731 = vmatprep.mubr.f32.mxu0 0.0
    %732 = vmatmul.mubr.f32.gmra.mrb[0].mxu0 %v635
    %v733 = vpop.f32.mrb[0].mxu0
    %v734 = vadd.f32 %v660, %v733
    %v735 = vpop.f32.mrb[0].mxu0
    %736 = vmatprep.mubr.f32.mxu0 0.0
    %737 = vmatmul.mubr.f32.gmra.mrb[0].mxu0 %v636
    %v738 = vpop.f32.mrb[0].mxu0
    %v739 = vadd.f32 %v660, %v738
    %v740 = vpop.f32.mrb[0].mxu0
    %741 = vmatprep.mubr.f32.mxu0 0.0
    %742 = vmatmul.mubr.f32.gmra.mrb[0].mxu0 %v637
    %v743 = vpop.f32.mrb[0].mxu0
    %v744 = vadd.f32 %v660, %v743
    %v745 = vpop.f32.mrb[0].mxu0
    %746 = vmatprep.mubr.f32.mxu0 0.0
    %747 = vmatmul.mubr.f32.gmra.mrb[0].mxu0 %v638
    %v748 = vpop.f32.mrb[0].mxu0
    %v749 = vadd.f32 %v660, %v748
    %v750 = vpop.f32.mrb[0].mxu0
    %751 = vdwg.mxu0
    %v752 = vxor.u32 %v729, 2147483648
    %v753 = vxor.u32 %v734, 2147483648
    %v754 = vxor.u32 %v739, 2147483648
    %v755 = vxor.u32 %v744, 2147483648
    %v756 = vxor.u32 %v749, 2147483648
    %v757 = vmul.f32 %v752, 1.442695
    %v758 = vpow.pop %v757
    %v759 = vmul.f32 %v753, 1.442695
    %v760 = vpow.pop %v759
    %v761 = vmul.f32 %v754, 1.442695
    %v762 = vpow.pop %v761
    %v763 = vmul.f32 %v755, 1.442695
    %v764 = vpow.pop %v763
    %v765 = vmul.f32 %v756, 1.442695
    %v766 = vpow.pop %v765
    %v767 = vadd.f32 %v758, 1.0
    %v768 = vadd.f32 %v760, 1.0
    %v769 = vadd.f32 %v762, 1.0
    %v770 = vadd.f32 %v764, 1.0
    %v771 = vadd.f32 %v766, 1.0
    %v772 = vrcp.pop %v767
    %v773 = vmul.f32 1.0, %v772
    %v774 = vrcp.pop %v768
    %v775 = vmul.f32 1.0, %v774
    %v776 = vrcp.pop %v769
    %v777 = vmul.f32 1.0, %v776
    %v778 = vrcp.pop %v770
    %v779 = vmul.f32 1.0, %v778
    %v780 = vrcp.pop %v771
    %v781 = vmul.f32 1.0, %v780
    %782 = vst [vmem:[#allocation10] sm:$0xff] %v773
    %783 = vst [vmem:[#allocation10 + $0x8] sm:$0xff] %v775
    %784 = vst [vmem:[#allocation10 + $0x10] sm:$0xff] %v777
    %785 = vst [vmem:[#allocation10 + $0x18] sm:$0xff] %v779
    %786 = vst [vmem:[#allocation10 + $0x20] sm:$0xff] %v781
    // Predicated region
    $region46: #{tpu_custom_call.1} parent=1 // pred_check
      _
    $region47: #{tpu_custom_call.1} parent=1 // pred_check_branch
      %788 = sbr.rel (0) target = $region49
    $region48: #{tpu_custom_call.1} parent=1 // pred_region
      %s790 = ssub.s32 640, 640
      %791 = vsyncadd [#allocation4], %s790
      %s792 = sshll.u32 [#allocation10], 4
      %s793 = int_to_ptr.vmem [resolvable:$true] %s792
      %798 = dma.vmem_to_hbm [thread:$0]  %s793, 640, %s7, [#allocation4], 128, 128, 8
    $region49: #{tpu_custom_call.1} parent=1 // pred_fallthru
      _
    // Predicated region
    $region50: #{tpu_custom_call.1} parent=1 // pred_check
      _
    $region51: #{tpu_custom_call.1} parent=1 // pred_check_branch
      %800 = sbr.rel (0) target = $region53
    $region52: #{tpu_custom_call.1} parent=1 // pred_region
      %801 = dma.done [#allocation4], 640
    $region53: #{tpu_custom_call.1} parent=1 // pred_fallthru
      _
    %802 = vsyncpa [#allocation3], 1
    %803 = vsyncpa [#allocation6], 1
    %804 = vsyncpa [#allocation9], 1
    %805 = vsyncpa [#allocation4], 1

</llo_original>
